<compile_context>
chip_gen: v6e
topology: v6e:2x2x1
jax: 0.10.0
libtpu: 0.0.40
codegen_flags: <defaults>
</compile_context>

<pallas_src>
import functools

import jax
import jax.numpy as jnp
from jax.experimental import pallas as pl
from jax.experimental.pallas import tpu as pltpu


def _round_up(n, m):
    return (n + m - 1) // m * m


# ----------------------------------------------------------------------------
# Kernel: three matmuls (bf16 x bf16 -> f32 acc) + bias + ReLU.
# The dueling combine is already folded into w3 / b3 at pack time.
# ----------------------------------------------------------------------------
def dueling_q_kernel(x_ref, slab_ref, out_ref, *, layout):
    L = layout
    in_dim, F1, F2, OUT_PAD = L["in_dim"], L["f1"], L["f2"], L["out_pad"]
    r_w1, r_w2, r_w3, r_b = L["r_w1"], L["r_w2"], L["r_w3"], L["r_bias"]

    x = x_ref[...]                                        # (TB, in_dim) bf16

    # Static slices of the VMEM-resident bf16 parameter slab.
    w1 = slab_ref[r_w1:r_w1 + in_dim, :F1]                # (in,  F1)
    w2 = slab_ref[r_w2:r_w2 + F1, :F2]                    # (F1,  F2)
    w3 = slab_ref[r_w3:r_w3 + F2, :OUT_PAD]               # (F2, 128)
    b1 = slab_ref[r_b:r_b + 1, :F1]                       # (1,  F1)
    b2 = slab_ref[r_b + 1:r_b + 2, :F2]                   # (1,  F2)
    b3 = slab_ref[r_b + 2:r_b + 3, :OUT_PAD]              # (1, 128)

    # bf16 MXU operands, f32 accumulation; bias/ReLU on the f32 accumulator.
    h = jnp.dot(x, w1, preferred_element_type=jnp.float32) + b1
    h = jnp.maximum(h, 0.0).astype(jnp.bfloat16)
    h = jnp.dot(h, w2, preferred_element_type=jnp.float32) + b2
    h = jnp.maximum(h, 0.0).astype(jnp.bfloat16)
    q = jnp.dot(h, w3, preferred_element_type=jnp.float32) + b3   # (TB, 128)

    out_ref[...] = q.astype(out_ref.dtype)   # lane-dense, unmasked store


# ----------------------------------------------------------------------------
# Parameter packing (done once, outside the kernel)
# ----------------------------------------------------------------------------
def pack_params(params, input_dim, output_dim):
    """Fuse both streams, fold the dueling combine into layer 3, pack to bf16."""
    H1 = 2 * input_dim            # per-stream hidden 1
    H2 = 4 * input_dim            # per-stream hidden 2
    F1 = 2 * H1                   # fused hidden 1
    F2 = 2 * H2                   # fused hidden 2
    OUT_PAD = 128                 # lane-padded head width
    A = output_dim
    assert A <= OUT_PAD

    # Layer 1: simple column concat (value cols 0..H1-1, advantage H1..F1-1).
    w1f = jnp.concatenate([params["wv1"], params["wa1"]], axis=1)   # (in, F1)
    b1f = jnp.concatenate([params["bv1"], params["ba1"]], axis=1)   # (1, F1)

    # Layer 2: block-diagonal (value cols 0..H2-1, advantage H2..F2-1).
    w2f = jnp.zeros((F1, F2), jnp.float32)
    w2f = w2f.at[:H1, :H2].set(params["wv2"])
    w2f = w2f.at[H1:, H2:].set(params["wa2"])
    b2f = jnp.concatenate([params["bv2"], params["ba2"]], axis=1)   # (1, F2)

    # Layer 3 with the dueling combine folded in:
    #   Q_j = h_a @ (Wa3[:,j] - mean_k Wa3[:,k]) + h_v @ Wv3[:,0]
    #         + (ba3_j - mean(ba3) + bv3)
    # Columns A..127 stay zero (lane padding -> exact zeros in the output).
    wa3c = params["wa3"] - jnp.mean(params["wa3"], axis=1, keepdims=True)
    w3p = jnp.zeros((F2, OUT_PAD), jnp.float32)
    w3p = w3p.at[:H2, :A].set(jnp.broadcast_to(params["wv3"], (H2, A)))
    w3p = w3p.at[H2:, :A].set(wa3c)
    b3p = jnp.zeros((1, OUT_PAD), jnp.float32)
    b3p = b3p.at[0, :A].set(
        params["ba3"][0] - jnp.mean(params["ba3"]) + params["bv3"][0, 0])

    # Row layout: weight sections 8-aligned; all three biases share one 8-row
    # block (compacted vs. three separate blocks).
    r_w1 = 0
    r_w2 = r_w1 + _round_up(input_dim, 8)
    r_w3 = r_w2 + _round_up(F1, 8)
    r_bias = r_w3 + _round_up(F2, 8)
    total_rows = r_bias + 8
    width = max(F2, OUT_PAD)

    slab = jnp.zeros((total_rows, width), jnp.float32)
    slab = slab.at[r_w1:r_w1 + input_dim, :F1].set(w1f)
    slab = slab.at[r_w2:r_w2 + F1, :F2].set(w2f)
    slab = slab.at[r_w3:r_w3 + F2, :OUT_PAD].set(w3p)
    slab = slab.at[r_bias, :F1].set(b1f[0])
    slab = slab.at[r_bias + 1, :F2].set(b2f[0])
    slab = slab.at[r_bias + 2, :OUT_PAD].set(b3p[0])
    slab = slab.astype(jnp.bfloat16)      # bf16 operands for the MXU

    layout = dict(in_dim=input_dim, f1=F1, f2=F2, out_pad=OUT_PAD,
                  n_actions=A, r_w1=r_w1, r_w2=r_w2, r_w3=r_w3, r_bias=r_bias)
    return slab, layout


# ----------------------------------------------------------------------------
# Wrapper
# ----------------------------------------------------------------------------
def dueling_q_forward(x, slab, layout, *, batch_tile=2048,
                      out_dtype=jnp.float32, return_padded=False):
    B, in_dim = x.shape
    assert in_dim == layout["in_dim"]
    A = layout["n_actions"]
    F1, F2, OUT_PAD = layout["f1"], layout["f2"], layout["out_pad"]

    # bf16 input halves the x DMA; accumulation stays f32 inside the kernel.
    x_bf = x.astype(jnp.bfloat16)

    # Batch tile: large default to amortize the ~0.35 us per-grid-step
    # pipeline overhead, but capped at ceil(B/2) (8-aligned) so there are
    # >= 2 grid steps whenever possible and the "parallel" batch axis can
    # shard across both v7x TensorCores (no-op on single-TC v5e/v6e).
    if B <= 8:
        TB = B
    else:
        TB = min(_round_up(batch_tile, 8),
                 max(8, _round_up(pl.cdiv(B, 2), 8)))
    grid = (pl.cdiv(B, TB),)

    flops = 2 * B * (in_dim * F1 + F1 * F2 + F2 * OUT_PAD)
    bytes_accessed = (2 * x_bf.size + 2 * slab.size
                      + B * OUT_PAD * jnp.dtype(out_dtype).itemsize)

    out_padded = pl.pallas_call(
        functools.partial(dueling_q_kernel, layout=layout),
        out_shape=jax.ShapeDtypeStruct((B, OUT_PAD), out_dtype),
        grid_spec=pltpu.PrefetchScalarGridSpec(
            num_scalar_prefetch=0,
            grid=grid,
            in_specs=[
                # x: tiled over the batch.
                pl.BlockSpec((TB, in_dim), lambda i: (i, 0)),
                # Parameter slab: constant index_map -> DMA'd once, resident.
                # NOTE: could be single-buffered (pipeline_mode=pl.Buffered(1));
                # left at the default for portability, it is only ~0.2 MiB bf16.
                pl.BlockSpec(slab.shape, lambda i: (0, 0)),
            ],
            out_specs=pl.BlockSpec((TB, OUT_PAD), lambda i: (i, 0)),
        ),
        compiler_params=pltpu.CompilerParams(
            dimension_semantics=("parallel",)),
        cost_estimate=pl.CostEstimate(flops=flops, transcendentals=0,
                                      bytes_accessed=bytes_accessed),
    )(x_bf, slab)

    if return_padded:
        return out_padded            # (B, 128); columns A..127 are exact zeros
    # TODO(synk): fuse the downstream consumer (greedy argmax for getAction /
    # the training-loss gather) into the kernel to avoid this extra HBM pass
    # over the 16x lane-padded output.
    return out_padded[:, :A]


# ----------------------------------------------------------------------------
# Init + plain-JAX f32 reference (mirrors the PyTorch module)
# ----------------------------------------------------------------------------
def init_params(key, input_dim, output_dim):
    """PyTorch-Linear-style init; weights stored as (in, out), biases (1, out)."""
    dims_value = [(input_dim, input_dim * 2),
                  (input_dim * 2, input_dim * 4),
                  (input_dim * 4, 1)]
    dims_adv = [(input_dim, input_dim * 2),
                (input_dim * 2, input_dim * 4),
                (input_dim * 4, output_dim)]

    params = {}
    keys = jax.random.split(key, 12)
    k = iter(keys)

    def make(prefix, dims):
        for i, (fan_in, fan_out) in enumerate(dims, start=1):
            bound = 1.0 / (fan_in ** 0.5)
            params[f"w{prefix}{i}"] = jax.random.uniform(
                next(k), (fan_in, fan_out), minval=-bound, maxval=bound,
                dtype=jnp.float32)
            params[f"b{prefix}{i}"] = jax.random.uniform(
                next(k), (1, fan_out), minval=-bound, maxval=bound,
                dtype=jnp.float32)

    make("v", dims_value)
    make("a", dims_adv)
    return params


def reference_forward(x, params):
    def mlp3(p, pre):
        h = jnp.maximum(x @ p[f"w{pre}1"] + p[f"b{pre}1"], 0.0)
        h = jnp.maximum(h @ p[f"w{pre}2"] + p[f"b{pre}2"], 0.0)
        return h @ p[f"w{pre}3"] + p[f"b{pre}3"]

    values = mlp3(params, "v")
    adv = mlp3(params, "a")
    return adv - jnp.mean(adv, axis=-1, keepdims=True) + values


# TODO(synk): getAction (epsilon-greedy / CategoricalMasked sampling) and
# save/load are host-side control logic, not part of the forward-pass kernel.

if __name__ == "__main__":
    input_dim = 32
    output_dim = 8
    batch = 8

    key = jax.random.PRNGKey(0)
    key_x, key_p = jax.random.split(key)

    x = jax.random.normal(key_x, (batch, input_dim), dtype=jnp.float32)
    params = init_params(key_p, input_dim, output_dim)
    slab, layout = pack_params(params, input_dim, output_dim)

    q_kernel = jax.block_until_ready(dueling_q_forward(x, slab, layout))
    q_ref = jax.block_until_ready(reference_forward(x, params))

    assert q_kernel.shape == (batch, output_dim)
    # bf16 matmul operands vs. the all-f32 reference -> relaxed tolerance.
    assert jnp.allclose(q_kernel, q_ref, atol=5e-2, rtol=5e-2), (
        "Pallas kernel output mismatch vs reference")

    print("KERNEL_OK")
</pallas_src>

<mosaic_0001>
module attributes {stable_mosaic.version = 11 : i64} {
  func.func @dueling_q_kernel(%arg0: i32, %arg1: memref<8x32xbf16, #tpu.memory_space<vmem>>, %arg2: memref<424x256xbf16, #tpu.memory_space<vmem>>, %arg3: memref<8x128xf32, #tpu.memory_space<vmem>>) attributes {dimension_semantics = [#tpu.dimension_semantics<parallel>], iteration_bounds = array<i64: 1>, scalar_prefetch = 0 : i64, scratch_operands = 0 : i64, tpu.core_type = #tpu.core_type<tc>, window_params = [{transform_indices = @transform_0, window_bounds = array<i64: 8, 32>}, {pipeline_mode = #tpu.pipeline_mode<synchronous>, transform_indices = @transform_1, window_bounds = array<i64: 424, 256>}, {transform_indices = @transform_2, window_bounds = array<i64: 8, 128>}]} {
    %c0 = arith.constant 0 : index
    %c0_0 = arith.constant 0 : index
    %0 = vector.load %arg1[%c0, %c0_0] : memref<8x32xbf16, #tpu.memory_space<vmem>>, vector<8x32xbf16>
    %c0_1 = arith.constant 0 : index
    %c0_2 = arith.constant 0 : index
    %1 = vector.load %arg2[%c0_1, %c0_2] : memref<424x256xbf16, #tpu.memory_space<vmem>>, vector<32x128xbf16>
    %c32 = arith.constant 32 : index
    %c0_3 = arith.constant 0 : index
    %2 = vector.load %arg2[%c32, %c0_3] : memref<424x256xbf16, #tpu.memory_space<vmem>>, vector<128x256xbf16>
    %c160 = arith.constant 160 : index
    %c0_4 = arith.constant 0 : index
    %3 = vector.load %arg2[%c160, %c0_4] : memref<424x256xbf16, #tpu.memory_space<vmem>>, vector<256x128xbf16>
    %c416 = arith.constant 416 : index
    %c0_5 = arith.constant 0 : index
    %4 = vector.load %arg2[%c416, %c0_5] : memref<424x256xbf16, #tpu.memory_space<vmem>>, vector<1x128xbf16>
    %c417 = arith.constant 417 : index
    %c0_6 = arith.constant 0 : index
    %5 = vector.load %arg2[%c417, %c0_6] : memref<424x256xbf16, #tpu.memory_space<vmem>>, vector<1x256xbf16>
    %c418 = arith.constant 418 : index
    %c0_7 = arith.constant 0 : index
    %6 = vector.load %arg2[%c418, %c0_7] : memref<424x256xbf16, #tpu.memory_space<vmem>>, vector<1x128xbf16>
    %cst = arith.constant dense<0.000000e+00> : vector<8x128xf32>
    %7 = tpu.matmul %0, %1, %cst {dimension_numbers = #tpu.dot_dimension_numbers<[1], [0], [0], [1], [0, 0, 1, 1], [], []>} : vector<8x32xbf16>, vector<32x128xbf16>, vector<8x128xf32> -> vector<8x128xf32>
    %8 = arith.extf %4 : vector<1x128xbf16> to vector<1x128xf32>
    %9 = vector.broadcast %8 : vector<1x128xf32> to vector<8x128xf32>
    %10 = arith.addf %7, %9 : vector<8x128xf32>
    %cst_8 = arith.constant 0.000000e+00 : f32
    %11 = vector.broadcast %cst_8 : f32 to vector<8x128xf32>
    %12 = arith.maximumf %10, %11 : vector<8x128xf32>
    %13 = arith.truncf %12 : vector<8x128xf32> to vector<8x128xbf16>
    %cst_9 = arith.constant dense<0.000000e+00> : vector<8x256xf32>
    %14 = tpu.matmul %13, %2, %cst_9 {dimension_numbers = #tpu.dot_dimension_numbers<[1], [0], [0], [1], [0, 0, 1, 1], [], []>} : vector<8x128xbf16>, vector<128x256xbf16>, vector<8x256xf32> -> vector<8x256xf32>
    %15 = arith.extf %5 : vector<1x256xbf16> to vector<1x256xf32>
    %16 = vector.broadcast %15 : vector<1x256xf32> to vector<8x256xf32>
    %17 = arith.addf %14, %16 : vector<8x256xf32>
    %cst_10 = arith.constant 0.000000e+00 : f32
    %18 = vector.broadcast %cst_10 : f32 to vector<8x256xf32>
    %19 = arith.maximumf %17, %18 : vector<8x256xf32>
    %20 = arith.truncf %19 : vector<8x256xf32> to vector<8x256xbf16>
    %cst_11 = arith.constant dense<0.000000e+00> : vector<8x128xf32>
    %21 = tpu.matmul %20, %3, %cst_11 {dimension_numbers = #tpu.dot_dimension_numbers<[1], [0], [0], [1], [0, 0, 1, 1], [], []>} : vector<8x256xbf16>, vector<256x128xbf16>, vector<8x128xf32> -> vector<8x128xf32>
    %22 = arith.extf %6 : vector<1x128xbf16> to vector<1x128xf32>
    %23 = vector.broadcast %22 : vector<1x128xf32> to vector<8x128xf32>
    %24 = arith.addf %21, %23 : vector<8x128xf32>
    %c0_12 = arith.constant 0 : index
    %c0_13 = arith.constant 0 : index
    %25 = vector.load %arg3[%c0_12, %c0_13] : memref<8x128xf32, #tpu.memory_space<vmem>>, vector<8x128xf32>
    tpu.vector_store %arg3[%c0_12, %c0_13], %24 {strides = array<i32>} : memref<8x128xf32, #tpu.memory_space<vmem>>, vector<8x128xf32>,
    return
  }
  func.func @transform_0(%arg0: i32) -> (i32, i32) {
    %c0_i32 = arith.constant 0 : i32
    %c0_i32_0 = arith.constant 0 : i32
    return %arg0, %c0_i32 : i32, i32
  }
  func.func @transform_1(%arg0: i32) -> (i32, i32) {
    %c0_i32 = arith.constant 0 : i32
    %c0_i32_0 = arith.constant 0 : i32
    %c0_i32_1 = arith.constant 0 : i32
    return %c0_i32, %c0_i32_0 : i32, i32
  }
  func.func @transform_2(%arg0: i32) -> (i32, i32) {
    %c0_i32 = arith.constant 0 : i32
    %c0_i32_0 = arith.constant 0 : i32
    return %arg0, %c0_i32 : i32, i32
  }
}

</mosaic_0001>

<llo_original>
// kernel: tpu_custom_call.1
$region0: #{tpu_custom_call.1}
  #allocation0 [shape = 'u32[]', space=smem, size = 0x4, offset = 0x4, fixed_abs, tag = 'smem constant byte address 0x4 - core index']
  #allocation1 [shape = 'u32[144,128]{1,0:T(1,128)}', space=vmem, size = 0x12000, scoped, tag = 'internal scratch']
  %s0 = inlined_call_operand.hbm [shape: bf16[8,32], index: 0, kind: input, shape index: {}]
  %s1 = inlined_call_operand.hbm [shape: bf16[424,256], index: 1, kind: input, shape index: {}]
  %s2 = inlined_call_operand.hbm [shape: f32[8,128], index: 2, kind: output, shape index: {}]
  %s3 = sld [smem:[#allocation0]]
  $region26: #{tpu_custom_call.1} parent=0
    _
  %s5 = ssub.s32 1, %s3
  %s6 = scalar_select 0, %s5, %s3
  $region1: #{tpu_custom_call.1} parent=0
    #allocation2 [shape = 'u8[2048]{0}', space=vmem, size = 0x800, scoped, tag = 'input window, operand 0, single buffered']
    #allocation3 [shape = 's32[1]{0}', space=sflag, size = 0x4, scoped, tag = 'scoped memory for tpu_custom_call.1']
    #allocation4 [shape = 's32[1]{0}', space=sflag, size = 0x4, scoped, tag = 'scoped memory for tpu_custom_call.1']
    #allocation5 [shape = 'u8[217088]{0}', space=vmem, size = 0x35000, scoped, tag = 'input window, operand 1, single buffered']
    #allocation6 [shape = 's32[1]{0}', space=sflag, size = 0x4, scoped, tag = 'scoped memory for tpu_custom_call.1']
    #allocation7 [shape = 'u8[4096]{0}', space=vmem, size = 0x1000, scoped, tag = 'output window, operand 0, single buffered']
    %7 = vsyncpa [#allocation3], 0
    %8 = vsyncpa [#allocation6], 0
    %9 = vsyncpa [#allocation4], 0
    // Predicated region
    $region2: #{tpu_custom_call.1} parent=1 // pred_check
      _
    $region3: #{tpu_custom_call.1} parent=1 // pred_check_branch
      %11 = sbr.rel (0) target = $region5
    $region4: #{tpu_custom_call.1} parent=1 // pred_region
      %s13 = ssub.s32 64, 64
      %14 = vsyncadd [#allocation3], %s13
      %s16 = sshll.u32 [#allocation2], 4
      %s17 = int_to_ptr.vmem [resolvable:$true] %s16
      %19 = dma.hbm_to_vmem [thread:$0]  %s0, 64, %s17, [#allocation3]
    $region5: #{tpu_custom_call.1} parent=1 // pred_fallthru
      _
    // Predicated region
    $region6: #{tpu_custom_call.1} parent=1 // pred_check
      _
    $region7: #{tpu_custom_call.1} parent=1 // pred_check_branch
      %21 = sbr.rel (0) target = $region9
    $region8: #{tpu_custom_call.1} parent=1 // pred_region
      %s23 = ssub.s32 6784, 6784
      %24 = vsyncadd [#allocation6], %s23
      %s25 = sshll.u32 [#allocation5], 4
      %s26 = int_to_ptr.vmem [resolvable:$true] %s25
      %31 = dma.hbm_to_vmem [thread:$0]  %s1, 6784, %s26, [#allocation6], 128, 128, 8
    $region9: #{tpu_custom_call.1} parent=1 // pred_fallthru
      _
    // Predicated region
    $region10: #{tpu_custom_call.1} parent=1 // pred_check
      _
    $region11: #{tpu_custom_call.1} parent=1 // pred_check_branch
      %33 = sbr.rel (0) target = $region13
    $region12: #{tpu_custom_call.1} parent=1 // pred_region
      %34 = dma.done [#allocation3], 64
    $region13: #{tpu_custom_call.1} parent=1 // pred_fallthru
      _
    // Predicated region
    $region14: #{tpu_custom_call.1} parent=1 // pred_check
      _
    $region15: #{tpu_custom_call.1} parent=1 // pred_check_branch
      %36 = sbr.rel (0) target = $region17
    $region16: #{tpu_custom_call.1} parent=1 // pred_region
      %37 = dma.done [#allocation6], 6784
    $region17: #{tpu_custom_call.1} parent=1 // pred_fallthru
      _
    %v39 = vld [vmem:[#allocation2] sm:$0xf]
    %v40 = vld [vmem:[#allocation5] sm:$0xf]
    %v41 = vld [vmem:[#allocation5 + $0x8] sm:$0xf]
    %v42 = vld [vmem:[#allocation5 + $0x10] sm:$0xf]
    %v43 = vld [vmem:[#allocation5 + $0x18] sm:$0xf]
    %v44 = vld [vmem:[#allocation5 + $0x20] sm:$0xff]
    %v45 = vld [vmem:[#allocation5 + $0x28] sm:$0xff]
    %v46 = vld [vmem:[#allocation5 + $0x30] sm:$0xff]
    %v47 = vld [vmem:[#allocation5 + $0x38] sm:$0xff]
    %v48 = vld [vmem:[#allocation5 + $0x40] sm:$0xff]
    %v49 = vld [vmem:[#allocation5 + $0x48] sm:$0xff]
    %v50 = vld [vmem:[#allocation5 + $0x50] sm:$0xff]
    %v51 = vld [vmem:[#allocation5 + $0x58] sm:$0xff]
    %v52 = vld [vmem:[#allocation5 + $0x60] sm:$0xff]
    %v53 = vld [vmem:[#allocation5 + $0x68] sm:$0xff]
    %v54 = vld [vmem:[#allocation5 + $0x70] sm:$0xff]
    %v55 = vld [vmem:[#allocation5 + $0x78] sm:$0xff]
    %v56 = vld [vmem:[#allocation5 + $0x80] sm:$0xff]
    %v57 = vld [vmem:[#allocation5 + $0x88] sm:$0xff]
    %v58 = vld [vmem:[#allocation5 + $0x90] sm:$0xff]
    %v59 = vld [vmem:[#allocation5 + $0x98] sm:$0xff]
    %v60 = vld [vmem:[#allocation5 + $0xa0] sm:$0xf]
    %v61 = vld [vmem:[#allocation5 + $0xa8] sm:$0xf]
    %v62 = vld [vmem:[#allocation5 + $0xb0] sm:$0xf]
    %v63 = vld [vmem:[#allocation5 + $0xb8] sm:$0xf]
    %v64 = vld [vmem:[#allocation5 + $0xc0] sm:$0xf]
    %v65 = vld [vmem:[#allocation5 + $0xc8] sm:$0xf]
    %v66 = vld [vmem:[#allocation5 + $0xd0] sm:$0xf]
    %v67 = vld [vmem:[#allocation5 + $0xd8] sm:$0xf]
    %v68 = vld [vmem:[#allocation5 + $0xe0] sm:$0xf]
    %v69 = vld [vmem:[#allocation5 + $0xe8] sm:$0xf]
    %v70 = vld [vmem:[#allocation5 + $0xf0] sm:$0xf]
    %v71 = vld [vmem:[#allocation5 + $0xf8] sm:$0xf]
    %v72 = vld [vmem:[#allocation5 + $0x100] sm:$0xf]
    %v73 = vld [vmem:[#allocation5 + $0x108] sm:$0xf]
    %v74 = vld [vmem:[#allocation5 + $0x110] sm:$0xf]
    %v75 = vld [vmem:[#allocation5 + $0x118] sm:$0xf]
    %v76 = vld [vmem:[#allocation5 + $0x120] sm:$0xf]
    %v77 = vld [vmem:[#allocation5 + $0x128] sm:$0xf]
    %v78 = vld [vmem:[#allocation5 + $0x130] sm:$0xf]
    %v79 = vld [vmem:[#allocation5 + $0x138] sm:$0xf]
    %v80 = vld [vmem:[#allocation5 + $0x140] sm:$0xf]
    %v81 = vld [vmem:[#allocation5 + $0x148] sm:$0xf]
    %v82 = vld [vmem:[#allocation5 + $0x150] sm:$0xf]
    %v83 = vld [vmem:[#allocation5 + $0x158] sm:$0xf]
    %v84 = vld [vmem:[#allocation5 + $0x160] sm:$0xf]
    %v85 = vld [vmem:[#allocation5 + $0x168] sm:$0xf]
    %v86 = vld [vmem:[#allocation5 + $0x170] sm:$0xf]
    %v87 = vld [vmem:[#allocation5 + $0x178] sm:$0xf]
    %v88 = vld [vmem:[#allocation5 + $0x180] sm:$0xf]
    %v89 = vld [vmem:[#allocation5 + $0x188] sm:$0xf]
    %v90 = vld [vmem:[#allocation5 + $0x190] sm:$0xf]
    %v91 = vld [vmem:[#allocation5 + $0x198] sm:$0xf]
    %v92 = vld [vmem:[#allocation5 + $0x1a0] sm:$0x1]
    %v93 = vld [vmem:[#allocation5 + $0x1a0] sm:$0x11]
    %v94 = vld [vmem:[#allocation5 + $0x1a0] sm:$0x2]
    %v95 = vunpack.c.l.bf16 %v92
    %v96 = vlaneseq
    %v97 = vshrl.u32 %v96, 7
    %v98 = vsub.s32 0, %v97
    %v99 = vrot.slane %v95, %v98
    %v104 = vunpack.c.l.b16 %v40
    %v105 = vunpack.c.l.b16 %v41
    %v106 = vunpack.c.l.b16 %v42
    %v107 = vunpack.c.l.b16 %v43
    %v108 = vpack.c.b16 %v105, %v104
    %v109 = vpack.c.b16 %v107, %v106
    %vm112 = vcmask 261120
    %v114 = vsel %vm112, %v39, 0
    %116 = vmatprep.subr.bf16.mxu0 0
    %117 = vmatpush1.bf16.msra.mxu0 0
    %118 = vmatprep.subr.bf16.mxu0 0
    %119 = vmatpush1.bf16.msra.mxu0 0
    %120 = vmatprep.subr.bf16.mxu0 0
    %121 = vmatpush1.bf16.msra.mxu0 0
    %122 = vmatprep.subr.bf16.mxu0 0
    %123 = vmatpush1.bf16.msra.mxu0 0
    %124 = vmatprep.subr.bf16.mxu0 0
    %125 = vmatpush1.bf16.msra.mxu0 0
    %126 = vmatprep.subr.bf16.mxu0 0
    %127 = vmatpush1.bf16.msra.mxu0 0
    %128 = vmatprep.subr.bf16.mxu0 0
    %129 = vmatpush1.bf16.msra.mxu0 %v109
    %130 = vmatprep.subr.bf16.mxu0 0
    %131 = vmatpush1.bf16.msra.mxu0 %v108
    %132 = vmatprep.subr.bf16.mxu0 0
    %133 = vmatpush2.bf16.msra.mxu0 0
    %134 = vmatprep.subr.bf16.mxu0 0
    %135 = vmatpush2.bf16.msra.mxu0 0
    %136 = vmatprep.subr.bf16.mxu0 0
    %137 = vmatpush2.bf16.msra.mxu0 0
    %138 = vmatprep.subr.bf16.mxu0 0
    %139 = vmatpush2.bf16.msra.mxu0 0
    %140 = vmatprep.subr.bf16.mxu0 0
    %141 = vmatpush2.bf16.msra.mxu0 0
    %142 = vmatprep.subr.bf16.mxu0 0
    %143 = vmatpush2.bf16.msra.mxu0 0
    %144 = vmatprep.subr.bf16.mxu0 0
    %145 = vmatpush2.bf16.msra.mxu0 0
    %146 = vmatprep.subr.bf16.mxu0 0
    %147 = vmatpush2.bf16.msra.mxu0 0
    %148 = vmatprep.mubr.bf16.mxu0 0
    %149 = vmatmul.mubr.bf16.gmra.mxu0 %v114
    %v150 = vpop.f32.mrf.mxu0
    %v151 = vadd.f32 %v99, %v150
    %v152 = vpop.f32.mrf.mxu0
    %v153 = vpop.f32.mrf.mxu0
    %v154 = vpop.f32.mrf.mxu0
    %155 = vdwg.mxu0
    %v156 = vmax.f32 %v151, 0.0
    %v157 = vpack.c.bf16 %v156, %v156
    %v158 = vunpack.c.l.bf16 %v93
    %v159 = vunpack.c.h.bf16 %v93
    %v160 = vlaneseq
    %v161 = vshrl.u32 %v160, 7
    %v162 = vsub.s32 1, %v161
    %v163 = vrot.slane %v158, %v162
    %v164 = vlaneseq
    %v165 = vshrl.u32 %v164, 7
    %v166 = vsub.s32 1, %v165
    %v167 = vrot.slane %v159, %v166
    %v184 = vunpack.c.l.b16 %v44
    %v185 = vunpack.c.h.b16 %v44
    %v186 = vunpack.c.l.b16 %v45
    %v187 = vunpack.c.h.b16 %v45
    %v188 = vunpack.c.l.b16 %v46
    %v189 = vunpack.c.h.b16 %v46
    %v190 = vunpack.c.l.b16 %v47
    %v191 = vunpack.c.h.b16 %v47
    %v192 = vunpack.c.l.b16 %v48
    %v193 = vunpack.c.h.b16 %v48
    %v194 = vunpack.c.l.b16 %v49
    %v195 = vunpack.c.h.b16 %v49
    %v196 = vunpack.c.l.b16 %v50
    %v197 = vunpack.c.h.b16 %v50
    %v198 = vunpack.c.l.b16 %v51
    %v199 = vunpack.c.h.b16 %v51
    %v200 = vunpack.c.l.b16 %v52
    %v201 = vunpack.c.h.b16 %v52
    %v202 = vunpack.c.l.b16 %v53
    %v203 = vunpack.c.h.b16 %v53
    %v204 = vunpack.c.l.b16 %v54
    %v205 = vunpack.c.h.b16 %v54
    %v206 = vunpack.c.l.b16 %v55
    %v207 = vunpack.c.h.b16 %v55
    %v208 = vunpack.c.l.b16 %v56
    %v209 = vunpack.c.h.b16 %v56
    %v210 = vunpack.c.l.b16 %v57
    %v211 = vunpack.c.h.b16 %v57
    %v212 = vunpack.c.l.b16 %v58
    %v213 = vunpack.c.h.b16 %v58
    %v214 = vunpack.c.l.b16 %v59
    %v215 = vunpack.c.h.b16 %v59
    %v216 = vpack.c.b16 %v186, %v184
    %v217 = vpack.c.b16 %v187, %v185
    %v218 = vpack.c.b16 %v190, %v188
    %v219 = vpack.c.b16 %v191, %v189
    %v220 = vpack.c.b16 %v194, %v192
    %v221 = vpack.c.b16 %v195, %v193
    %v222 = vpack.c.b16 %v198, %v196
    %v223 = vpack.c.b16 %v199, %v197
    %v224 = vpack.c.b16 %v202, %v200
    %v225 = vpack.c.b16 %v203, %v201
    %v226 = vpack.c.b16 %v206, %v204
    %v227 = vpack.c.b16 %v207, %v205
    %v228 = vpack.c.b16 %v210, %v208
    %v229 = vpack.c.b16 %v211, %v209
    %v230 = vpack.c.b16 %v214, %v212
    %v231 = vpack.c.b16 %v215, %v213
    %248 = vmatprep.subr.bf16.mxu0 %v231
    %249 = vmatpush1.bf16.msra.mxu0 %v230
    %250 = vmatprep.subr.bf16.mxu0 %v229
    %251 = vmatpush1.bf16.msra.mxu0 %v228
    %252 = vmatprep.subr.bf16.mxu0 %v227
    %253 = vmatpush1.bf16.msra.mxu0 %v226
    %254 = vmatprep.subr.bf16.mxu0 %v225
    %255 = vmatpush1.bf16.msra.mxu0 %v224
    %256 = vmatprep.subr.bf16.mxu0 %v223
    %257 = vmatpush1.bf16.msra.mxu0 %v222
    %258 = vmatprep.subr.bf16.mxu0 %v221
    %259 = vmatpush1.bf16.msra.mxu0 %v220
    %260 = vmatprep.subr.bf16.mxu0 %v219
    %261 = vmatpush1.bf16.msra.mxu0 %v218
    %262 = vmatprep.subr.bf16.mxu0 %v217
    %263 = vmatpush1.bf16.msra.mxu0 %v216
    %264 = vmatprep.subr.bf16.mxu0 0
    %265 = vmatpush2.bf16.msra.mxu0 0
    %266 = vmatprep.subr.bf16.mxu0 0
    %267 = vmatpush2.bf16.msra.mxu0 0
    %268 = vmatprep.subr.bf16.mxu0 0
    %269 = vmatpush2.bf16.msra.mxu0 0
    %270 = vmatprep.subr.bf16.mxu0 0
    %271 = vmatpush2.bf16.msra.mxu0 0
    %272 = vmatprep.subr.bf16.mxu0 0
    %273 = vmatpush2.bf16.msra.mxu0 0
    %274 = vmatprep.subr.bf16.mxu0 0
    %275 = vmatpush2.bf16.msra.mxu0 0
    %276 = vmatprep.subr.bf16.mxu0 0
    %277 = vmatpush2.bf16.msra.mxu0 0
    %278 = vmatprep.subr.bf16.mxu0 0
    %279 = vmatpush2.bf16.msra.mxu0 0
    %280 = vmatprep.mubr.bf16.mxu0 0
    %281 = vmatmul.mubr.bf16.gmra.mxu0 %v157
    %v282 = vpop.f32.mrf.mxu0
    %v283 = vadd.f32 %v163, %v282
    %v284 = vpop.f32.mrf.mxu0
    %v285 = vadd.f32 %v167, %v284
    %v286 = vpop.f32.mrf.mxu0
    %v287 = vpop.f32.mrf.mxu0
    %288 = vdwg.mxu0
    %v289 = vmax.f32 %v283, 0.0
    %v290 = vmax.f32 %v285, 0.0
    %v291 = vpack.c.bf16 %v289, %v289
    %v292 = vpack.c.bf16 %v290, %v290
    %v293 = vunpack.c.l.bf16 %v94
    %v294 = vlaneseq
    %v295 = vshrl.u32 %v294, 7
    %v296 = vsub.s32 2, %v295
    %v297 = vrot.slane %v293, %v296
    %v330 = vunpack.c.l.b16 %v60
    %v331 = vunpack.c.l.b16 %v61
    %v332 = vunpack.c.l.b16 %v62
    %v333 = vunpack.c.l.b16 %v63
    %v334 = vunpack.c.l.b16 %v64
    %v335 = vunpack.c.l.b16 %v65
    %v336 = vunpack.c.l.b16 %v66
    %v337 = vunpack.c.l.b16 %v67
    %v338 = vunpack.c.l.b16 %v68
    %v339 = vunpack.c.l.b16 %v69
    %v340 = vunpack.c.l.b16 %v70
    %v341 = vunpack.c.l.b16 %v71
    %v342 = vunpack.c.l.b16 %v72
    %v343 = vunpack.c.l.b16 %v73
    %v344 = vunpack.c.l.b16 %v74
    %v345 = vunpack.c.l.b16 %v75
    %v346 = vunpack.c.l.b16 %v76
    %v347 = vunpack.c.l.b16 %v77
    %v348 = vunpack.c.l.b16 %v78
    %v349 = vunpack.c.l.b16 %v79
    %v350 = vunpack.c.l.b16 %v80
    %v351 = vunpack.c.l.b16 %v81
    %v352 = vunpack.c.l.b16 %v82
    %v353 = vunpack.c.l.b16 %v83
    %v354 = vunpack.c.l.b16 %v84
    %v355 = vunpack.c.l.b16 %v85
    %v356 = vunpack.c.l.b16 %v86
    %v357 = vunpack.c.l.b16 %v87
    %v358 = vunpack.c.l.b16 %v88
    %v359 = vunpack.c.l.b16 %v89
    %v360 = vunpack.c.l.b16 %v90
    %v361 = vunpack.c.l.b16 %v91
    %v362 = vpack.c.b16 %v331, %v330
    %v363 = vpack.c.b16 %v333, %v332
    %v364 = vpack.c.b16 %v335, %v334
    %v365 = vpack.c.b16 %v337, %v336
    %v366 = vpack.c.b16 %v339, %v338
    %v367 = vpack.c.b16 %v341, %v340
    %v368 = vpack.c.b16 %v343, %v342
    %v369 = vpack.c.b16 %v345, %v344
    %v370 = vpack.c.b16 %v347, %v346
    %v371 = vpack.c.b16 %v349, %v348
    %v372 = vpack.c.b16 %v351, %v350
    %v373 = vpack.c.b16 %v353, %v352
    %v374 = vpack.c.b16 %v355, %v354
    %v375 = vpack.c.b16 %v357, %v356
    %v376 = vpack.c.b16 %v359, %v358
    %v377 = vpack.c.b16 %v361, %v360
    %394 = vmatprep.subr.bf16.mxu0 0
    %395 = vmatpush1.bf16.msra.mxu0 %v369
    %396 = vmatprep.subr.bf16.mxu0 0
    %397 = vmatpush1.bf16.msra.mxu0 %v368
    %398 = vmatprep.subr.bf16.mxu0 0
    %399 = vmatpush1.bf16.msra.mxu0 %v367
    %400 = vmatprep.subr.bf16.mxu0 0
    %401 = vmatpush1.bf16.msra.mxu0 %v366
    %402 = vmatprep.subr.bf16.mxu0 0
    %403 = vmatpush1.bf16.msra.mxu0 %v365
    %404 = vmatprep.subr.bf16.mxu0 0
    %405 = vmatpush1.bf16.msra.mxu0 %v364
    %406 = vmatprep.subr.bf16.mxu0 0
    %407 = vmatpush1.bf16.msra.mxu0 %v363
    %408 = vmatprep.subr.bf16.mxu0 0
    %409 = vmatpush1.bf16.msra.mxu0 %v362
    %410 = vmatprep.subr.bf16.mxu0 0
    %411 = vmatpush2.bf16.msra.mxu0 %v377
    %412 = vmatprep.subr.bf16.mxu0 0
    %413 = vmatpush2.bf16.msra.mxu0 %v376
    %414 = vmatprep.subr.bf16.mxu0 0
    %415 = vmatpush2.bf16.msra.mxu0 %v375
    %416 = vmatprep.subr.bf16.mxu0 0
    %417 = vmatpush2.bf16.msra.mxu0 %v374
    %418 = vmatprep.subr.bf16.mxu0 0
    %419 = vmatpush2.bf16.msra.mxu0 %v373
    %420 = vmatprep.subr.bf16.mxu0 0
    %421 = vmatpush2.bf16.msra.mxu0 %v372
    %422 = vmatprep.subr.bf16.mxu0 0
    %423 = vmatpush2.bf16.msra.mxu0 %v371
    %424 = vmatprep.subr.bf16.mxu0 0
    %425 = vmatpush2.bf16.msra.mxu0 %v370
    %426 = vmatprep.mubr.bf16.mxu0 %v292
    %427 = vmatmul.mubr.bf16.gmra.mxu0 %v291
    %v428 = vpop.f32.mrf.mxu0
    %v429 = vadd.f32 %v297, %v428
    %v430 = vpop.f32.mrf.mxu0
    %v431 = vpop.f32.mrf.mxu0
    %v432 = vpop.f32.mrf.mxu0
    %433 = vdwg.mxu0
    %434 = vst [vmem:[#allocation7] sm:$0xff] %v429
    // Predicated region
    $region18: #{tpu_custom_call.1} parent=1 // pred_check
      _
    $region19: #{tpu_custom_call.1} parent=1 // pred_check_branch
      %436 = sbr.rel (0) target = $region21
    $region20: #{tpu_custom_call.1} parent=1 // pred_region
      %s438 = ssub.s32 128, 128
      %439 = vsyncadd [#allocation4], %s438
      %s441 = sshll.u32 [#allocation7], 4
      %s442 = int_to_ptr.vmem [resolvable:$true] %s441
      %444 = dma.vmem_to_hbm [thread:$0]  %s442, 128, %s2, [#allocation4]
    $region21: #{tpu_custom_call.1} parent=1 // pred_fallthru
      _
    // Predicated region
    $region22: #{tpu_custom_call.1} parent=1 // pred_check
      _
    $region23: #{tpu_custom_call.1} parent=1 // pred_check_branch
      %446 = sbr.rel (0) target = $region25
    $region24: #{tpu_custom_call.1} parent=1 // pred_region
      %447 = dma.done [#allocation4], 128
    $region25: #{tpu_custom_call.1} parent=1 // pred_fallthru
      _
    %448 = vsyncpa [#allocation3], 1
    %449 = vsyncpa [#allocation6], 1
    %450 = vsyncpa [#allocation4], 1

</llo_original>
